<compile_context>
chip_gen: v6e
topology: v6e:2x2x1
jax: 0.10.0
libtpu: 0.0.40
codegen_flags: <defaults>
</compile_context>

<pallas_src>
import jax
import jax.numpy as jnp
from jax.experimental import pallas as pl
from jax.experimental.pallas import tpu as pltpu


def _fold_kernel(scalars_ref, x_ref, n_ref, o_ref):
    # scalars_ref (SMEM): [leak, inv_nn]
    leak = scalars_ref[0]
    inv_nn = scalars_ref[1]

    x = x_ref[...]                              # (tb, W) native dtype
    n = n_ref[...]                              # (1, W)  native dtype

    # Row-wise dot, accumulated in f32; divide replaced by precomputed 1/(n.n).
    scales = jnp.sum(
        x.astype(jnp.float32) * n.astype(jnp.float32),
        axis=-1, keepdims=True,
    ) * inv_nn                                  # (tb, 1) f32

    indicator = jnp.where(scales > 1.0, 1.0, leak)          # (tb, 1) f32
    coef = (2.0 * indicator * (1.0 - scales)).astype(x.dtype)  # (tb, 1)

    # out = x + coef * n   (only two full-width VPU ops)
    o_ref[...] = x + coef * n


def _auto_block_b(B, W, itemsize):
    """Pick a batch tile: big enough to amortize per-step overhead, small
    enough to fit a conservative VMEM budget on every TPU generation."""
    # Pipeline buffers: x in (2x double-buffer) + out (2x) in native dtype,
    # plus ~2 f32 temporaries created by the body.
    budget_bytes = 24 * 1024 * 1024
    per_row_bytes = W * (4 * itemsize + 2 * 4)
    bb = budget_bytes // max(per_row_bytes, 1)
    bb = int(min(bb, 2048))
    # Keep >= 2 grid steps so v7x's two TensorCores both get work.
    if B > 8:
        bb = min(bb, -(-B // 2))
    bb = max(8, (bb // 8) * 8)
    return bb
    # TODO(synk): for very large W (>~8k) add a W-tiled two-pass variant with
    # an "arbitrary" reduction axis instead of keeping the full row resident.


def fold_forward(x, n, leak=0.0, *, block_b=None):
    """Pallas implementation of Fold.forward.

    x: [B, W] float array, n: [W] float parameter.
    """
    B, W = x.shape
    assert n.shape == (W,)

    # Zero-norm guard (matches the PyTorch forward) and hoisted 1/(n.n).
    n = jnp.where(jnp.linalg.norm(n) == 0, n + 1e-8, n)
    n_f32 = n.astype(jnp.float32)
    inv_nn = 1.0 / jnp.dot(n_f32, n_f32)
    n2d = n.reshape(1, W).astype(x.dtype)

    # leak + inv_nn as SMEM scalars -> no recompile when leak changes.
    scalars = jnp.stack(
        [jnp.asarray(leak, jnp.float32), inv_nn.astype(jnp.float32)]
    )

    if block_b is None:
        block_b = _auto_block_b(B, W, x.dtype.itemsize)
    block_b = max(8, min(block_b, max(B, 8)))

    grid = (pl.cdiv(B, block_b),)

    # Explicit VMEM limit with headroom (safe on v7x's 64 MiB physical VMEM).
    vmem_limit = 48 * 1024 * 1024

    return pl.pallas_call(
        _fold_kernel,
        out_shape=jax.ShapeDtypeStruct((B, W), x.dtype),
        grid_spec=pltpu.PrefetchScalarGridSpec(
            num_scalar_prefetch=1,
            grid=grid,
            in_specs=[
                pl.BlockSpec((block_b, W), lambda i, s: (i, 0)),
                pl.BlockSpec((1, W), lambda i, s: (0, 0)),
            ],
            out_specs=pl.BlockSpec((block_b, W), lambda i, s: (i, 0)),
        ),
        compiler_params=pltpu.CompilerParams(
            dimension_semantics=("parallel",),
            vmem_limit_bytes=vmem_limit,
        ),
    )(scalars, x, n2d)


def fold_reference(x, n, leak=0.0):
    """Pure-JAX reference matching the PyTorch forward."""
    n = jnp.where(jnp.linalg.norm(n) == 0, n + 1e-8, n)
    scales = (x @ n) / (n @ n)
    indicator = (scales > 1).astype(x.dtype)
    indicator = indicator + (1 - indicator) * leak
    projection = scales[:, None] * n
    return x + 2 * indicator[:, None] * (n - projection)


if __name__ == "__main__":
    key = jax.random.PRNGKey(0)
    kx, kn = jax.random.split(key)

    batch, width = 16, 128
    leak = 0.1

    x = jax.random.normal(kx, (batch, width), dtype=jnp.float32)
    # Deterministic parameter init, matching torch.randn(width) * (2/width)**0.5
    n = jax.random.normal(kn, (width,), dtype=jnp.float32) * (2.0 / width) ** 0.5

    out = fold_forward(x, n, leak=leak)
    out = jax.block_until_ready(out)

    ref = fold_reference(x, n, leak=leak)
    assert out.shape == (batch, width)
    assert jnp.allclose(out, ref, atol=1e-5, rtol=1e-5), "mismatch vs reference"

    print("KERNEL_OK")
</pallas_src>

<mosaic_0001>
module attributes {stable_mosaic.version = 11 : i64} {
  func.func @_fold_kernel(%arg0: i32, %arg1: memref<2xf32, #tpu.memory_space<smem>>, %arg2: memref<8x128xf32, #tpu.memory_space<vmem>>, %arg3: memref<1x128xf32, #tpu.memory_space<vmem>>, %arg4: memref<8x128xf32, #tpu.memory_space<vmem>>) attributes {dimension_semantics = [#tpu.dimension_semantics<parallel>], iteration_bounds = array<i64: 2>, scalar_prefetch = 1 : i64, scratch_operands = 0 : i64, tpu.core_type = #tpu.core_type<tc>, window_params = [{transform_indices = @transform_0, window_bounds = array<i64: 8, 128>}, {pipeline_mode = #tpu.pipeline_mode<synchronous>, transform_indices = @transform_1, window_bounds = array<i64: 1, 128>}, {transform_indices = @transform_2, window_bounds = array<i64: 8, 128>}]} {
    %c0 = arith.constant 0 : index
    %0 = memref.load %arg1[%c0] : memref<2xf32, #tpu.memory_space<smem>>
    %c1 = arith.constant 1 : index
    %1 = memref.load %arg1[%c1] : memref<2xf32, #tpu.memory_space<smem>>
    %c0_0 = arith.constant 0 : index
    %c0_1 = arith.constant 0 : index
    %2 = vector.load %arg2[%c0_0, %c0_1] : memref<8x128xf32, #tpu.memory_space<vmem>>, vector<8x128xf32>
    %c0_2 = arith.constant 0 : index
    %c0_3 = arith.constant 0 : index
    %3 = vector.load %arg3[%c0_2, %c0_3] : memref<1x128xf32, #tpu.memory_space<vmem>>, vector<1x128xf32>
    %4 = vector.broadcast %3 : vector<1x128xf32> to vector<8x128xf32>
    %5 = arith.mulf %2, %4 : vector<8x128xf32>
    %cst = arith.constant dense<0.000000e+00> : vector<8xf32>
    %6 = vector.multi_reduction <add>, %5, %cst [1] : vector<8x128xf32> to vector<8xf32>
    %7 = vector.shape_cast %6 : vector<8xf32> to vector<8x1xf32>
    %8 = vector.broadcast %1 : f32 to vector<8x1xf32>
    %9 = arith.mulf %7, %8 : vector<8x1xf32>
    %cst_4 = arith.constant 1.000000e+00 : f32
    %10 = vector.broadcast %cst_4 : f32 to vector<8x1xf32>
    %11 = arith.cmpf ogt, %9, %10 : vector<8x1xf32>
    %cst_5 = arith.constant 1.000000e+00 : f32
    %12 = vector.broadcast %cst_5 : f32 to vector<8x1xf32>
    %13 = vector.broadcast %0 : f32 to vector<8x1xf32>
    %14 = arith.select %11, %12, %13 : vector<8x1xi1>, vector<8x1xf32>
    %cst_6 = arith.constant 2.000000e+00 : f32
    %15 = vector.broadcast %cst_6 : f32 to vector<8x1xf32>
    %16 = arith.mulf %15, %14 : vector<8x1xf32>
    %cst_7 = arith.constant 1.000000e+00 : f32
    %17 = vector.broadcast %cst_7 : f32 to vector<8x1xf32>
    %18 = arith.subf %17, %9 : vector<8x1xf32>
    %19 = arith.mulf %16, %18 : vector<8x1xf32>
    %20 = vector.broadcast %19 : vector<8x1xf32> to vector<8x128xf32>
    %21 = vector.broadcast %3 : vector<1x128xf32> to vector<8x128xf32>
    %22 = arith.mulf %20, %21 : vector<8x128xf32>
    %23 = arith.addf %2, %22 : vector<8x128xf32>
    %c0_8 = arith.constant 0 : index
    %c0_9 = arith.constant 0 : index
    %24 = vector.load %arg4[%c0_8, %c0_9] : memref<8x128xf32, #tpu.memory_space<vmem>>, vector<8x128xf32>
    tpu.vector_store %arg4[%c0_8, %c0_9], %23 {strides = array<i32>} : memref<8x128xf32, #tpu.memory_space<vmem>>, vector<8x128xf32>,
    return
  }
  func.func @transform_0(%arg0: i32, %arg1: memref<2xf32, #tpu.memory_space<smem>>) -> (i32, i32) {
    %c0_i32 = arith.constant 0 : i32
    %c0_i32_0 = arith.constant 0 : i32
    return %arg0, %c0_i32 : i32, i32
  }
  func.func @transform_1(%arg0: i32, %arg1: memref<2xf32, #tpu.memory_space<smem>>) -> (i32, i32) {
    %c0_i32 = arith.constant 0 : i32
    %c0_i32_0 = arith.constant 0 : i32
    %c0_i32_1 = arith.constant 0 : i32
    return %c0_i32, %c0_i32_0 : i32, i32
  }
  func.func @transform_2(%arg0: i32, %arg1: memref<2xf32, #tpu.memory_space<smem>>) -> (i32, i32) {
    %c0_i32 = arith.constant 0 : i32
    %c0_i32_0 = arith.constant 0 : i32
    return %arg0, %c0_i32 : i32, i32
  }
}

</mosaic_0001>

<llo_original>
// kernel: tpu_custom_call.1
$region0: #{tpu_custom_call.1}
  #allocation0 [shape = 'u32[]', space=smem, size = 0x4, offset = 0x4, fixed_abs, tag = 'smem constant byte address 0x4 - core index']
  #allocation1 [shape = 'u32[144,128]{1,0:T(1,128)}', space=vmem, size = 0x12000, scoped, tag = 'internal scratch']
  #allocation2 [shape = 's32[1]{0}', space=sflag, size = 0x4, scoped, tag = 'scoped memory for tpu_custom_call.1']
  #allocation3 [shape = 'u8[512]{0}', space=smem, size = 0x200, scoped, tag = 'prefetched SMEM operand 0']
  %s0 = inlined_call_operand.hbm [shape: f32[2], index: 0, kind: input, shape index: {}]
  %s1 = inlined_call_operand.hbm [shape: f32[16,128], index: 1, kind: input, shape index: {}]
  %s2 = inlined_call_operand.vmem [shape: f32[1,128], index: 2, kind: input, shape index: {}]
  %s3 = inlined_call_operand.hbm [shape: f32[16,128], index: 3, kind: output, shape index: {}]
  %s4 = sld [smem:[#allocation0]]
  $region45: #{tpu_custom_call.1} parent=0
    _
  %s6 = ssub.s32 1, %s4
  %s7 = scalar_select 0, %s6, %s4
  %9 = dma.hbm_to_smem %s0, 16, [#allocation3], [#allocation2]
  %10 = dma.done [#allocation2], 16
  %11 = sfence
  $region1: #{tpu_custom_call.1} parent=0
    #allocation4 [shape = 'u8[8192]{0}', space=vmem, size = 0x2000, scoped, tag = 'input window, operand 1']
    #allocation5 [shape = 's32[2]{0}', space=sflag, size = 0x8, scoped, tag = 'scoped memory for tpu_custom_call.1']
    #allocation6 [shape = 's32[2]{0}', space=sflag, size = 0x8, scoped, tag = 'scoped memory for tpu_custom_call.1']
    #allocation7 [shape = 'u8[8192]{0}', space=vmem, size = 0x2000, scoped, tag = 'output window, operand 0']
    %12 = vsyncpa [#allocation5], 0
    %s13 = scalar_lea.sflag [#allocation5], 1
    %14 = vsyncpa %s13, 0
    %15 = vsyncpa [#allocation6], 0
    %s16 = scalar_lea.sflag [#allocation6], 1
    %17 = vsyncpa %s16, 0
    loop: start=0, step=1, limit=4
    $region2: #{tpu_custom_call.1} parent=1 // loop_pre_header
      _
    $region3: #{tpu_custom_call.1} parent=1 // loop_header
      %s19 = sphi 0, %s23
      %p20 = scmp.ge.s32.totalorder %s19, 4
      %s29 = sphi 0, %s31
      %s32 = sphi 0, %s29
      %s33 = sphi 0, %s32
      %s49 = sphi 0, %s33
      %s53 = sphi 0, %s53
      %s55 = sphi 0, %s53
      %s56 = sphi 0, %s55
      %s70 = sphi 0, %s56
      %s76 = sphi 0, %s78
      %s79 = sphi 0, %s76
      %s80 = sphi 0, %s79
      %s96 = sphi 0, %s80
    $region4: #{tpu_custom_call.1} parent=1 // loop_header_branch
      %22 = sbr.rel (%p20) target = $region8
    $region5: #{tpu_custom_call.1} parent=1 // loop_body
      %s24 = ssub.s32 %s19, 1
      %s25 = ssub.s32 %s19, 2
      %s26 = sadd.s32 %s19, 1
      %s27 = ssub.s32 %s19, %s26
      %p28 = scmp.eq.s32.totalorder %s27, 0
      %s30 = sadd.s32 %s29, 1
      %s31 = scalar_select %p28, %s29, %s30
      %p34 = pneg %p28
      %p35 = scmp.eq.s32.totalorder %s19, 1
      %p36 = por %p34, %p35
      %p37 = scmp.ne.s32.totalorder %s29, %s32
      %p38 = scmp.eq.s32.totalorder %s19, 0
      %p39 = por %p37, %p38
      %p40 = scmp.ne.s32.totalorder %s29, %s32
      %p41 = scmp.eq.s32.totalorder %s24, 1
      %p42 = por %p40, %p41
      %p43 = scmp.ne.s32.totalorder %s32, %s33
      %p44 = scmp.eq.s32.totalorder %s24, 0
      %p45 = por %p43, %p44
      %p46 = scmp.ne.s32.totalorder %s32, %s33
      %p47 = scmp.eq.s32.totalorder %s25, 1
      %p48 = por %p46, %p47
      %p50 = scmp.ne.s32.totalorder %s33, %s49
      %p51 = scmp.eq.s32.totalorder %s25, 0
      %p52 = por %p50, %p51
      %s54 = sadd.s32 %s53, 1
      %p57 = scmp.eq.s32.totalorder %s19, 1
      %p58 = scmp.ne.s32.totalorder %s53, %s55
      %p59 = scmp.eq.s32.totalorder %s19, 0
      %p60 = por %p58, %p59
      %p61 = scmp.ne.s32.totalorder %s53, %s55
      %p62 = scmp.eq.s32.totalorder %s24, 1
      %p63 = por %p61, %p62
      %p64 = scmp.ne.s32.totalorder %s55, %s56
      %p65 = scmp.eq.s32.totalorder %s24, 0
      %p66 = por %p64, %p65
      %p67 = scmp.ne.s32.totalorder %s55, %s56
      %p68 = scmp.eq.s32.totalorder %s25, 1
      %p69 = por %p67, %p68
      %p71 = scmp.ne.s32.totalorder %s56, %s70
      %p72 = scmp.eq.s32.totalorder %s25, 0
      %p73 = por %p71, %p72
      %s74 = ssub.s32 %s19, %s26
      %p75 = scmp.eq.s32.totalorder %s74, 0
      %s77 = sadd.s32 %s76, 1
      %s78 = scalar_select %p75, %s76, %s77
      %p81 = pneg %p75
      %p82 = scmp.eq.s32.totalorder %s19, 1
      %p83 = por %p81, %p82
      %p84 = scmp.ne.s32.totalorder %s76, %s79
      %p85 = scmp.eq.s32.totalorder %s19, 0
      %p86 = por %p84, %p85
      %p87 = scmp.ne.s32.totalorder %s76, %s79
      %p88 = scmp.eq.s32.totalorder %s24, 1
      %p89 = por %p87, %p88
      %p90 = scmp.ne.s32.totalorder %s79, %s80
      %p91 = scmp.eq.s32.totalorder %s24, 0
      %p92 = por %p90, %p91
      %p93 = scmp.ne.s32.totalorder %s79, %s80
      %p94 = scmp.eq.s32.totalorder %s25, 1
      %p95 = por %p93, %p94
      %p97 = scmp.ne.s32.totalorder %s80, %s96
      %p98 = scmp.eq.s32.totalorder %s25, 0
      %p99 = por %p97, %p98
      %p100 = scmp.le.s32.totalorder 1, %s19
      %p101 = scmp.lt.s32.totalorder %s19, 3
      %p102 = pnand %p100, %p101
      %p103 = pneg %p102
      // Predicated region
      $region9: #{tpu_custom_call.1} parent=5 // pred_check
        _
      $region10: #{tpu_custom_call.1} parent=5 // pred_check_branch
        %105 = sbr.rel (%p102) target = $region12
      $region11: #{tpu_custom_call.1} parent=5 // pred_region
        %s106 = ssub.s32 %s19, 1
        // Predicated region
        $region13: #{tpu_custom_call.1} parent=11 // pred_check
          %p107 = pneg %p66
        $region14: #{tpu_custom_call.1} parent=11 // pred_check_branch
          %109 = sbr.rel (%p107) target = $region16
        $region15: #{tpu_custom_call.1} parent=11 // pred_region
          _
        $region16: #{tpu_custom_call.1} parent=11 // pred_fallthru
          _
      $region12: #{tpu_custom_call.1} parent=5 // pred_fallthru
        _
      %p110 = scmp.lt.s32.totalorder %s19, 2
      // Predicated region
      $region17: #{tpu_custom_call.1} parent=5 // pred_check
        %p111 = pneg %p110
      $region18: #{tpu_custom_call.1} parent=5 // pred_check_branch
        %113 = sbr.rel (%p111) target = $region20
      $region19: #{tpu_custom_call.1} parent=5 // pred_region
        // Predicated region
        $region21: #{tpu_custom_call.1} parent=19 // pred_check
          %p114 = pneg %p39
        $region22: #{tpu_custom_call.1} parent=19 // pred_check_branch
          %116 = sbr.rel (%p114) target = $region24
        $region23: #{tpu_custom_call.1} parent=19 // pred_region
          %s117 = sand.u32 %s29, 1
          %s118 = scalar_lea.sflag [#allocation5], %s117
          %s119 = sand.u32 %s29, 1
          %s120 = smul.addr %s119, 8
          %s121 = scalar_lea.vmem [#allocation4], %s120
          %s123 = ssub.s32 128, 128
          %124 = vsyncadd %s118, %s123
          %s125 = smul.addr %s19, 128
          %s126 = scalar_lea.hbm %s1, %s125
          %s128 = sshll.u32 %s121, 4
          %s129 = int_to_ptr.vmem [resolvable:$true] %s128
          %131 = dma.hbm_to_vmem [thread:$0]  %s126, 128, %s129, %s118
        $region24: #{tpu_custom_call.1} parent=19 // pred_fallthru
          _
      $region20: #{tpu_custom_call.1} parent=5 // pred_fallthru
        _
      %p132 = scmp.le.s32.totalorder 1, %s19
      %p133 = scmp.lt.s32.totalorder %s19, 3
      %p134 = pnand %p132, %p133
      %p135 = pneg %p134
      // Predicated region
      $region25: #{tpu_custom_call.1} parent=5 // pred_check
        _
      $region26: #{tpu_custom_call.1} parent=5 // pred_check_branch
        %137 = sbr.rel (%p134) target = $region28
      $region27: #{tpu_custom_call.1} parent=5 // pred_region
        %s138 = ssub.s32 %s19, 1
        %s139 = sand.u32 %s32, 1
        %s140 = scalar_lea.sflag [#allocation5], %s139
        %s141 = sand.u32 %s32, 1
        %s142 = smul.addr %s141, 8
        %s143 = scalar_lea.vmem [#allocation4], %s142
        // Predicated region
        $region29: #{tpu_custom_call.1} parent=27 // pred_check
          %p144 = pneg %p45
        $region30: #{tpu_custom_call.1} parent=27 // pred_check_branch
          %146 = sbr.rel (%p144) target = $region32
        $region31: #{tpu_custom_call.1} parent=27 // pred_region
          %147 = dma.done %s140, 128
        $region32: #{tpu_custom_call.1} parent=27 // pred_fallthru
          _
        %s148 = sand.u32 %s32, 1
        %s149 = scalar_lea.sflag [#allocation5], %s148
        %s150 = sand.u32 %s32, 1
        %s151 = smul.addr %s150, 8
        %s152 = scalar_lea.vmem [#allocation4], %s151
        %p153 = pneg %p45
        %p154 = pneg %p42
        %p155 = pneg %p66
        %p156 = pneg %p63
        %p157 = pneg %p92
        %p158 = pneg %p89
        %s159 = sand.u32 %s79, 1
        %s160 = scalar_lea.sflag [#allocation6], %s159
        %s161 = sand.u32 %s79, 1
        %s162 = smul.addr %s161, 8
        %s163 = scalar_lea.vmem [#allocation7], %s162
        %s164 = sld [smem:[#allocation3]]
        %s165 = sld [smem:[#allocation3 + $0x1]]
        %v166 = vld [vmem:[%s143] sm:$0xff]
        %v167 = vld [vmem:[%s2] sm:$0x1]
        %v169 = vlaneseq
        %v170 = vshrl.u32 %v169, 7
        %v171 = vsub.s32 0, %v170
        %v172 = vrot.slane %v167, %v171
        %v174 = vmul.f32 %v166, %v172
        %175 = vadd.xlane.f32.xlu0 %v174
        %v176 = vpop.xlane.xlu0 %175
        %v177 = vstv %s165
        %v178 = vmul.f32 %v176, %v177
        %vm179 = vcmp.gt.f32.partialorder %v178, 1.0
        %v180 = vstv %s164
        %v181 = vsel %vm179, 1.0, %v180
        %v182 = vmul.f32 %v181, 2.0
        %v183 = vsub.f32 1.0, %v178
        %v184 = vmul.f32 %v182, %v183
        %v185 = vmul.f32 %v184, %v172
        %v186 = vadd.f32 %v166, %v185
        %187 = vst [vmem:[%s163] sm:$0xff] %v186
        %s188 = sand.u32 %s79, 1
        %s189 = scalar_lea.sflag [#allocation6], %s188
        %s190 = sand.u32 %s79, 1
        %s191 = smul.addr %s190, 8
        %s192 = scalar_lea.vmem [#allocation7], %s191
        // Predicated region
        $region33: #{tpu_custom_call.1} parent=27 // pred_check
          %p193 = pneg %p89
        $region34: #{tpu_custom_call.1} parent=27 // pred_check_branch
          %195 = sbr.rel (%p193) target = $region36
        $region35: #{tpu_custom_call.1} parent=27 // pred_region
          %s197 = ssub.s32 128, 128
          %198 = vsyncadd %s189, %s197
          %s199 = smul.addr %s24, 128
          %s200 = scalar_lea.hbm %s3, %s199
          %s202 = sshll.u32 %s192, 4
          %s203 = int_to_ptr.vmem [resolvable:$true] %s202
          %205 = dma.vmem_to_hbm [thread:$0]  %s203, 128, %s200, %s189
        $region36: #{tpu_custom_call.1} parent=27 // pred_fallthru
          _
      $region28: #{tpu_custom_call.1} parent=5 // pred_fallthru
        _
      %p206 = scmp.le.s32.totalorder 2, %s19
      // Predicated region
      $region37: #{tpu_custom_call.1} parent=5 // pred_check
        %p207 = pneg %p206
      $region38: #{tpu_custom_call.1} parent=5 // pred_check_branch
        %209 = sbr.rel (%p207) target = $region40
      $region39: #{tpu_custom_call.1} parent=5 // pred_region
        %s210 = ssub.s32 %s19, 2
        // Predicated region
        $region41: #{tpu_custom_call.1} parent=39 // pred_check
          %p211 = pneg %p95
        $region42: #{tpu_custom_call.1} parent=39 // pred_check_branch
          %213 = sbr.rel (%p211) target = $region44
        $region43: #{tpu_custom_call.1} parent=39 // pred_region
          %s214 = sand.u32 %s80, 1
          %s215 = scalar_lea.sflag [#allocation6], %s214
          %s216 = sand.u32 %s80, 1
          %s217 = smul.addr %s216, 8
          %s218 = scalar_lea.vmem [#allocation7], %s217
          %219 = dma.done %s215, 128
        $region44: #{tpu_custom_call.1} parent=39 // pred_fallthru
          _
      $region40: #{tpu_custom_call.1} parent=5 // pred_fallthru
        _
    $region6: #{tpu_custom_call.1} parent=1 // loop_footer
      %s23 = sadd.s32 1, %s19
    $region7: #{tpu_custom_call.1} parent=1 // loop_footer_branch
      %18 = sbr.rel target = $region3
    $region8: #{tpu_custom_call.1} parent=1 // loop_exit
      _
    %220 = vsyncpa [#allocation5], 1
    %s221 = scalar_lea.sflag [#allocation5], 1
    %222 = vsyncpa %s221, 1
    %223 = vsyncpa [#allocation6], 1
    %s224 = scalar_lea.sflag [#allocation6], 1
    %225 = vsyncpa %s224, 1

</llo_original>
